<compile_context>
chip_gen: v7x
topology: tpu7x:2x2x1
jax: 0.10.0
libtpu: 0.0.40
codegen_flags: <defaults>
</compile_context>

<pallas_src>
import jax
import jax.numpy as jnp
from jax.experimental import pallas as pl
from jax.experimental.pallas import tpu as pltpu


def _round_up(x: int, m: int) -> int:
    return ((x + m - 1) // m) * m


def _make_mlp_kernel(num_layers: int, out_features: int):
    """Kernel closure for a fixed number of Linear+Tanh layers."""

    def kernel(x_ref, w_ref, b_ref, out_ref):
        # x_ref:  (bm, P)        feature-padded input rows (f32)
        # w_ref:  (L, P, P)      packed, zero-padded weights (VMEM resident)
        # b_ref:  (L, 1, P)      packed, zero-padded biases
        # out_ref:(out_features, bm)  transposed output -> lane-dense store
        h = x_ref[...]
        for l in range(num_layers):
            h = jnp.tanh(
                jnp.dot(h, w_ref[l], preferred_element_type=jnp.float32)
                + b_ref[l]
            )
        # (bm, P) -> (P, bm) on the XLU (idle slot), then keep the first
        # `out_features` rows so the HBM writeback is lane-dense.
        ht = jnp.transpose(h)
        out_ref[...] = ht[:out_features, :].astype(out_ref.dtype)

    return kernel


def mlp_shifter_forward(x, weights, biases, *, block_rows=1024):
    """Fused MLP-shifter forward pass.

    x:        [N, in_features] array
    weights:  list of [f_in, f_out] arrays
    biases:   list of [1, f_out] arrays (bias=True in the module)
    returns:  [N, 2] float32 (tanh-squashed shift)
    """
    num_layers = len(weights)
    N, in_features = x.shape
    out_features = weights[-1].shape[1]  # == 2

    # Common padded feature width (lanes) covering every layer's fan-in/out.
    maxf = max(max(int(w.shape[0]), int(w.shape[1])) for w in weights)
    maxf = max(maxf, in_features)
    P = _round_up(maxf, 128)

    # Batch tile: multiple of 128 (keeps transposed store lane-dense and the
    # MXU M-dim filled), capped so tiny batches don't over-pad.
    bm = min(_round_up(block_rows, 128), _round_up(N, 128))
    bm = max(bm, 128)
    n_pad = _round_up(N, bm)
    grid = n_pad // bm

    # Pack parameters into two zero-padded slabs (casts hoisted here).
    w_slab = jnp.zeros((num_layers, P, P), jnp.float32)
    b_slab = jnp.zeros((num_layers, 1, P), jnp.float32)
    for l, (w, b) in enumerate(zip(weights, biases)):
        fi, fo = int(w.shape[0]), int(w.shape[1])
        w_slab = w_slab.at[l, :fi, :fo].set(w.astype(jnp.float32))
        b_slab = b_slab.at[l, 0, :fo].set(
            jnp.reshape(b, (-1,)).astype(jnp.float32)
        )

    # Pad input rows to a multiple of bm and features to P. The zero padding
    # is inert: padded weight rows/cols are zero, padded rows are sliced off.
    x_p = jnp.pad(
        x.astype(jnp.float32), ((0, n_pad - N), (0, P - in_features))
    )

    kernel = _make_mlp_kernel(num_layers, out_features)

    grid_spec = pltpu.PrefetchScalarGridSpec(
        num_scalar_prefetch=0,
        grid=(grid,),
        in_specs=[
            pl.BlockSpec((bm, P), lambda i: (i, 0)),
            pl.BlockSpec((num_layers, P, P), lambda i: (0, 0, 0)),
            pl.BlockSpec((num_layers, 1, P), lambda i: (0, 0, 0)),
        ],
        out_specs=pl.BlockSpec((out_features, bm), lambda i: (0, i)),
    )

    out_t = pl.pallas_call(
        kernel,
        out_shape=jax.ShapeDtypeStruct((out_features, n_pad), jnp.float32),
        grid_spec=grid_spec,
        compiler_params=pltpu.CompilerParams(
            dimension_semantics=("parallel",),
        ),
    )(x_p, w_slab, b_slab)

    # Back to (N, 2); transpose/slice are cheap wrapper-side XLA ops.
    return jnp.transpose(out_t[:, :N])


def init_mlp_shifter_params(key, in_features, hidden_features, num_layers):
    """Init mirroring MLPShifter layer shapes (PyTorch default Linear init)."""
    dims = []
    f = in_features
    for _ in range(num_layers - 1):
        dims.append((f, hidden_features))
        f = hidden_features
    dims.append((f, 2))  # final Linear -> 2, then Tanh

    weights, biases = [], []
    for (fin, fout) in dims:
        key, kw, kb = jax.random.split(key, 3)
        bound = 1.0 / jnp.sqrt(jnp.float32(fin))
        weights.append(
            jax.random.uniform(kw, (fin, fout), jnp.float32, -bound, bound)
        )
        biases.append(
            jax.random.uniform(kb, (1, fout), jnp.float32, -bound, bound)
        )
    return weights, biases


def mlp_shifter_reference(x, weights, biases):
    h = x
    for w, b in zip(weights, biases):
        h = jnp.tanh(h @ w + b)
    return h


if __name__ == "__main__":
    # Shapes consistent with the module: in_features=4, hidden=32, num_layers=3.
    in_features = 4
    hidden_features = 32
    num_layers = 3

    key = jax.random.PRNGKey(0)
    key, kx1, kx2 = jax.random.split(key, 3)
    weights, biases = init_mlp_shifter_params(
        key, in_features, hidden_features, num_layers
    )

    # Case 1: small batch (single grid block).
    N1 = 16
    x1 = jax.random.normal(kx1, (N1, in_features), jnp.float32)
    out1 = jax.block_until_ready(mlp_shifter_forward(x1, weights, biases))
    ref1 = mlp_shifter_reference(x1, weights, biases)
    assert out1.shape == (N1, 2), out1.shape
    assert jnp.allclose(out1, ref1, atol=1e-5, rtol=1e-5), (
        float(jnp.max(jnp.abs(out1 - ref1)))
    )

    # Case 2: non-multiple batch, multi-block grid (exercises padding + tiling).
    N2 = 300
    x2 = jax.random.normal(kx2, (N2, in_features), jnp.float32)
    out2 = jax.block_until_ready(
        mlp_shifter_forward(x2, weights, biases, block_rows=128)
    )
    ref2 = mlp_shifter_reference(x2, weights, biases)
    assert out2.shape == (N2, 2), out2.shape
    assert jnp.allclose(out2, ref2, atol=1e-5, rtol=1e-5), (
        float(jnp.max(jnp.abs(out2 - ref2)))
    )

    # TODO(synk): regularizer() (reg_scale * sum |params|) is a host-side scalar
    # reduction over parameters and is not part of the forward hot path.
    print("KERNEL_OK")
</pallas_src>

<mosaic_0001>
module attributes {stable_mosaic.version = 11 : i64} {
  func.func @kernel(%arg0: i32, %arg1: memref<128x128xf32, #tpu.memory_space<vmem>>, %arg2: memref<3x128x128xf32, #tpu.memory_space<vmem>>, %arg3: memref<3x1x128xf32, #tpu.memory_space<vmem>>, %arg4: memref<2x128xf32, #tpu.memory_space<vmem>>) attributes {dimension_semantics = [#tpu.dimension_semantics<parallel>], iteration_bounds = array<i64: 1>, scalar_prefetch = 0 : i64, scratch_operands = 0 : i64, tpu.core_type = #tpu.core_type<tc>, window_params = [{transform_indices = @transform_0, window_bounds = array<i64: 128, 128>}, {pipeline_mode = #tpu.pipeline_mode<synchronous>, transform_indices = @transform_1, window_bounds = array<i64: 3, 128, 128>}, {pipeline_mode = #tpu.pipeline_mode<synchronous>, transform_indices = @transform_2, window_bounds = array<i64: 3, 1, 128>}, {transform_indices = @transform_3, window_bounds = array<i64: 2, 128>}]} {
    %c0 = arith.constant 0 : index
    %c0_0 = arith.constant 0 : index
    %0 = vector.load %arg1[%c0, %c0_0] : memref<128x128xf32, #tpu.memory_space<vmem>>, vector<128x128xf32>
    %c0_1 = arith.constant 0 : index
    %c0_2 = arith.constant 0 : index
    %c0_3 = arith.constant 0 : index
    %1 = vector.load %arg2[%c0_1, %c0_2, %c0_3] : memref<3x128x128xf32, #tpu.memory_space<vmem>>, vector<1x128x128xf32>
    %2 = vector.shape_cast %1 : vector<1x128x128xf32> to vector<128x128xf32>
    %cst = arith.constant dense<0.000000e+00> : vector<128x128xf32>
    %3 = tpu.matmul %0, %2, %cst {dimension_numbers = #tpu.dot_dimension_numbers<[1], [0], [0], [1], [0, 0, 1, 1], [], []>} : vector<128x128xf32>, vector<128x128xf32>, vector<128x128xf32> -> vector<128x128xf32>
    %c0_4 = arith.constant 0 : index
    %c0_5 = arith.constant 0 : index
    %c0_6 = arith.constant 0 : index
    %4 = vector.load %arg3[%c0_4, %c0_5, %c0_6] : memref<3x1x128xf32, #tpu.memory_space<vmem>>, vector<1x1x128xf32>
    %5 = vector.shape_cast %4 : vector<1x1x128xf32> to vector<1x128xf32>
    %6 = vector.broadcast %5 : vector<1x128xf32> to vector<128x128xf32>
    %7 = arith.addf %3, %6 : vector<128x128xf32>
    %8 = math.tanh %7 : vector<128x128xf32>
    %c1 = arith.constant 1 : index
    %c0_7 = arith.constant 0 : index
    %c0_8 = arith.constant 0 : index
    %9 = vector.load %arg2[%c1, %c0_7, %c0_8] : memref<3x128x128xf32, #tpu.memory_space<vmem>>, vector<1x128x128xf32>
    %10 = vector.shape_cast %9 : vector<1x128x128xf32> to vector<128x128xf32>
    %cst_9 = arith.constant dense<0.000000e+00> : vector<128x128xf32>
    %11 = tpu.matmul %8, %10, %cst_9 {dimension_numbers = #tpu.dot_dimension_numbers<[1], [0], [0], [1], [0, 0, 1, 1], [], []>} : vector<128x128xf32>, vector<128x128xf32>, vector<128x128xf32> -> vector<128x128xf32>
    %c1_10 = arith.constant 1 : index
    %c0_11 = arith.constant 0 : index
    %c0_12 = arith.constant 0 : index
    %12 = vector.load %arg3[%c1_10, %c0_11, %c0_12] : memref<3x1x128xf32, #tpu.memory_space<vmem>>, vector<1x1x128xf32>
    %13 = vector.shape_cast %12 : vector<1x1x128xf32> to vector<1x128xf32>
    %14 = vector.broadcast %13 : vector<1x128xf32> to vector<128x128xf32>
    %15 = arith.addf %11, %14 : vector<128x128xf32>
    %16 = math.tanh %15 : vector<128x128xf32>
    %c2 = arith.constant 2 : index
    %c0_13 = arith.constant 0 : index
    %c0_14 = arith.constant 0 : index
    %17 = vector.load %arg2[%c2, %c0_13, %c0_14] : memref<3x128x128xf32, #tpu.memory_space<vmem>>, vector<1x128x128xf32>
    %18 = vector.shape_cast %17 : vector<1x128x128xf32> to vector<128x128xf32>
    %cst_15 = arith.constant dense<0.000000e+00> : vector<128x128xf32>
    %19 = tpu.matmul %16, %18, %cst_15 {dimension_numbers = #tpu.dot_dimension_numbers<[1], [0], [0], [1], [0, 0, 1, 1], [], []>} : vector<128x128xf32>, vector<128x128xf32>, vector<128x128xf32> -> vector<128x128xf32>
    %c2_16 = arith.constant 2 : index
    %c0_17 = arith.constant 0 : index
    %c0_18 = arith.constant 0 : index
    %20 = vector.load %arg3[%c2_16, %c0_17, %c0_18] : memref<3x1x128xf32, #tpu.memory_space<vmem>>, vector<1x1x128xf32>
    %21 = vector.shape_cast %20 : vector<1x1x128xf32> to vector<1x128xf32>
    %22 = vector.broadcast %21 : vector<1x128xf32> to vector<128x128xf32>
    %23 = arith.addf %19, %22 : vector<128x128xf32>
    %24 = math.tanh %23 : vector<128x128xf32>
    %25 = tpu.transpose %24, [1, 0] : vector<128x128xf32> -> vector<128x128xf32>
    %26 = vector.extract_strided_slice %25 {offsets = [0, 0], sizes = [2, 128], strides = [1, 1]} : vector<128x128xf32> to vector<2x128xf32>
    %c0_19 = arith.constant 0 : index
    %c0_20 = arith.constant 0 : index
    %27 = vector.load %arg4[%c0_19, %c0_20] : memref<2x128xf32, #tpu.memory_space<vmem>>, vector<2x128xf32>
    tpu.vector_store %arg4[%c0_19, %c0_20], %26 {strides = array<i32>} : memref<2x128xf32, #tpu.memory_space<vmem>>, vector<2x128xf32>,
    return
  }
  func.func @transform_0(%arg0: i32) -> (i32, i32) {
    %c0_i32 = arith.constant 0 : i32
    %c0_i32_0 = arith.constant 0 : i32
    return %arg0, %c0_i32 : i32, i32
  }
  func.func @transform_1(%arg0: i32) -> (i32, i32, i32) {
    %c0_i32 = arith.constant 0 : i32
    %c0_i32_0 = arith.constant 0 : i32
    %c0_i32_1 = arith.constant 0 : i32
    %c0_i32_2 = arith.constant 0 : i32
    return %c0_i32, %c0_i32_0, %c0_i32_1 : i32, i32, i32
  }
  func.func @transform_2(%arg0: i32) -> (i32, i32, i32) {
    %c0_i32 = arith.constant 0 : i32
    %c0_i32_0 = arith.constant 0 : i32
    %c0_i32_1 = arith.constant 0 : i32
    %c0_i32_2 = arith.constant 0 : i32
    return %c0_i32, %c0_i32_0, %c0_i32_1 : i32, i32, i32
  }
  func.func @transform_3(%arg0: i32) -> (i32, i32) {
    %c0_i32 = arith.constant 0 : i32
    %c0_i32_0 = arith.constant 0 : i32
    return %c0_i32, %arg0 : i32, i32
  }
}

</mosaic_0001>

<llo_original>
// kernel: tpu_custom_call.1
$region0: #{tpu_custom_call.1}
  #allocation0 [shape = 'u32[]', space=smem, size = 0x4, offset = 0x4, fixed_abs, tag = 'smem constant byte address 0x4 - core index']
  #allocation1 [shape = 'u32[144,128]{1,0:T(1,128)}', space=vmem, size = 0x12000, scoped, tag = 'internal scratch']
  %s0 = inlined_call_operand.hbm [shape: f32[128,128], index: 0, kind: input, shape index: {}]
  %s1 = inlined_call_operand.hbm [shape: f32[3,128,128], index: 1, kind: input, shape index: {}]
  %s2 = inlined_call_operand.vmem [shape: f32[3,1,128], index: 2, kind: input, shape index: {}]
  %s3 = inlined_call_operand.hbm [shape: f32[2,128], index: 3, kind: output, shape index: {}]
  %s4 = sld [smem:[#allocation0]]
  $region30: #{tpu_custom_call.1} parent=0
    _
  %s6 = ssub.s32 1, %s4
  %s7 = scalar_select 0, %s6, %s4
  $region1: #{tpu_custom_call.1} parent=0
    #allocation2 [shape = 'u8[65536]{0}', space=vmem, size = 0x10000, scoped, tag = 'input window, operand 0, single buffered']
    #allocation3 [shape = 's32[1]{0}', space=sflag, size = 0x4, scoped, tag = 'scoped memory for tpu_custom_call.1']
    #allocation4 [shape = 's32[1]{0}', space=sflag, size = 0x4, scoped, tag = 'scoped memory for tpu_custom_call.1']
    #allocation5 [shape = 'u8[196608]{0}', space=vmem, size = 0x30000, scoped, tag = 'input window, operand 1, single buffered']
    #allocation6 [shape = 's32[1]{0}', space=sflag, size = 0x4, scoped, tag = 'scoped memory for tpu_custom_call.1']
    #allocation7 [shape = 'u8[1024]{0}', space=vmem, size = 0x400, scoped, tag = 'output window, operand 0, single buffered']
    %8 = vsyncpa [#allocation3], 0
    %9 = vsyncpa [#allocation6], 0
    %10 = vsyncpa [#allocation4], 0
    // Predicated region
    $region2: #{tpu_custom_call.1} parent=1 // pred_check
      _
    $region3: #{tpu_custom_call.1} parent=1 // pred_check_branch
      %12 = sbr.rel (0) target = $region5
    $region4: #{tpu_custom_call.1} parent=1 // pred_region
      %s14 = ssub.s32 2048, 2048
      %15 = vsyncadd [#allocation3], %s14
      %s16 = sshll.u32 [#allocation2], 4
      %s17 = int_to_ptr.vmem [resolvable:$true] %s16
      %22 = dma.hbm_to_vmem [thread:$0]  %s0, 2048, %s17, [#allocation3], 128, 128, 8
    $region5: #{tpu_custom_call.1} parent=1 // pred_fallthru
      _
    // Predicated region
    $region6: #{tpu_custom_call.1} parent=1 // pred_check
      _
    $region7: #{tpu_custom_call.1} parent=1 // pred_check_branch
      %24 = sbr.rel (0) target = $region9
    $region8: #{tpu_custom_call.1} parent=1 // pred_region
      %s26 = ssub.s32 6144, 6144
      %27 = vsyncadd [#allocation6], %s26
      %s28 = sshll.u32 [#allocation5], 4
      %s29 = int_to_ptr.vmem [resolvable:$true] %s28
      %34 = dma.hbm_to_vmem [thread:$0]  %s1, 6144, %s29, [#allocation6], 128, 128, 8
    $region9: #{tpu_custom_call.1} parent=1 // pred_fallthru
      _
    // Predicated region
    $region10: #{tpu_custom_call.1} parent=1 // pred_check
      _
    $region11: #{tpu_custom_call.1} parent=1 // pred_check_branch
      %36 = sbr.rel (0) target = $region13
    $region12: #{tpu_custom_call.1} parent=1 // pred_region
      _
    $region13: #{tpu_custom_call.1} parent=1 // pred_fallthru
      _
    // Predicated region
    $region14: #{tpu_custom_call.1} parent=1 // pred_check
      _
    $region15: #{tpu_custom_call.1} parent=1 // pred_check_branch
      %38 = sbr.rel (0) target = $region17
    $region16: #{tpu_custom_call.1} parent=1 // pred_region
      %39 = dma.done [#allocation3], 2048
    $region17: #{tpu_custom_call.1} parent=1 // pred_fallthru
      _
    // Predicated region
    $region18: #{tpu_custom_call.1} parent=1 // pred_check
      _
    $region19: #{tpu_custom_call.1} parent=1 // pred_check_branch
      %41 = sbr.rel (0) target = $region21
    $region20: #{tpu_custom_call.1} parent=1 // pred_region
      %42 = dma.done [#allocation6], 6144
    $region21: #{tpu_custom_call.1} parent=1 // pred_fallthru
      _
    %v43 = vld [vmem:[#allocation2] sm:$0xff]
    %v44 = vld [vmem:[#allocation2 + $0x8] sm:$0xff]
    %v45 = vld [vmem:[#allocation2 + $0x10] sm:$0xff]
    %v46 = vld [vmem:[#allocation2 + $0x18] sm:$0xff]
    %v47 = vld [vmem:[#allocation2 + $0x20] sm:$0xff]
    %v48 = vld [vmem:[#allocation2 + $0x28] sm:$0xff]
    %v49 = vld [vmem:[#allocation2 + $0x30] sm:$0xff]
    %v50 = vld [vmem:[#allocation2 + $0x38] sm:$0xff]
    %v51 = vld [vmem:[#allocation2 + $0x40] sm:$0xff]
    %v52 = vld [vmem:[#allocation2 + $0x48] sm:$0xff]
    %v53 = vld [vmem:[#allocation2 + $0x50] sm:$0xff]
    %v54 = vld [vmem:[#allocation2 + $0x58] sm:$0xff]
    %v55 = vld [vmem:[#allocation2 + $0x60] sm:$0xff]
    %v56 = vld [vmem:[#allocation2 + $0x68] sm:$0xff]
    %v57 = vld [vmem:[#allocation2 + $0x70] sm:$0xff]
    %v58 = vld [vmem:[#allocation2 + $0x78] sm:$0xff]
    %v59 = vld [vmem:[#allocation5] sm:$0xff]
    %v60 = vld [vmem:[#allocation5 + $0x8] sm:$0xff]
    %v61 = vld [vmem:[#allocation5 + $0x10] sm:$0xff]
    %v62 = vld [vmem:[#allocation5 + $0x18] sm:$0xff]
    %v63 = vld [vmem:[#allocation5 + $0x20] sm:$0xff]
    %v64 = vld [vmem:[#allocation5 + $0x28] sm:$0xff]
    %v65 = vld [vmem:[#allocation5 + $0x30] sm:$0xff]
    %v66 = vld [vmem:[#allocation5 + $0x38] sm:$0xff]
    %v67 = vld [vmem:[#allocation5 + $0x40] sm:$0xff]
    %v68 = vld [vmem:[#allocation5 + $0x48] sm:$0xff]
    %v69 = vld [vmem:[#allocation5 + $0x50] sm:$0xff]
    %v70 = vld [vmem:[#allocation5 + $0x58] sm:$0xff]
    %v71 = vld [vmem:[#allocation5 + $0x60] sm:$0xff]
    %v72 = vld [vmem:[#allocation5 + $0x68] sm:$0xff]
    %v73 = vld [vmem:[#allocation5 + $0x70] sm:$0xff]
    %v74 = vld [vmem:[#allocation5 + $0x78] sm:$0xff]
    %v75 = vld [vmem:[%s2] sm:$0x1]
    %v77 = vlaneseq
    %v78 = vshrl.u32 %v77, 7
    %v79 = vsub.s32 0, %v78
    %v80 = vrot.slane %v75, %v79
    %82 = vmatprep.subr.mxu0 0.0
    %83 = vmatpush1.msra.mxu0 %v59
    %84 = vmatprep.subr.mxu0 0.0
    %85 = vmatpush1.msra.mxu0 %v60
    %86 = vmatprep.subr.mxu0 0.0
    %87 = vmatpush1.msra.mxu0 %v61
    %88 = vmatprep.subr.mxu0 0.0
    %89 = vmatpush1.msra.mxu0 %v62
    %90 = vmatprep.subr.mxu0 0.0
    %91 = vmatpush1.msra.mxu0 %v63
    %92 = vmatprep.subr.mxu0 0.0
    %93 = vmatpush1.msra.mxu0 %v64
    %94 = vmatprep.subr.mxu0 0.0
    %95 = vmatpush1.msra.mxu0 %v65
    %96 = vmatprep.subr.mxu0 0.0
    %97 = vmatpush1.msra.mxu0 %v66
    %98 = vmatprep.subr.mxu0 0.0
    %99 = vmatpush1.msra.mxu0 %v67
    %100 = vmatprep.subr.mxu0 0.0
    %101 = vmatpush1.msra.mxu0 %v68
    %102 = vmatprep.subr.mxu0 0.0
    %103 = vmatpush1.msra.mxu0 %v69
    %104 = vmatprep.subr.mxu0 0.0
    %105 = vmatpush1.msra.mxu0 %v70
    %106 = vmatprep.subr.mxu0 0.0
    %107 = vmatpush1.msra.mxu0 %v71
    %108 = vmatprep.subr.mxu0 0.0
    %109 = vmatpush1.msra.mxu0 %v72
    %110 = vmatprep.subr.mxu0 0.0
    %111 = vmatpush1.msra.mxu0 %v73
    %112 = vmatprep.subr.mxu0 0.0
    %113 = vmatpush1.msra.mxu0 %v74
    %114 = vmatprep.subr.mxu0 0.0
    %115 = vmatpush1.msra.mxu0 0.0
    %116 = vmatprep.subr.mxu0 0.0
    %117 = vmatpush1.msra.mxu0 0.0
    %118 = vmatprep.subr.mxu0 0.0
    %119 = vmatpush1.msra.mxu0 0.0
    %120 = vmatprep.subr.mxu0 0.0
    %121 = vmatpush1.msra.mxu0 0.0
    %122 = vmatprep.subr.mxu0 0.0
    %123 = vmatpush1.msra.mxu0 0.0
    %124 = vmatprep.subr.mxu0 0.0
    %125 = vmatpush1.msra.mxu0 0.0
    %126 = vmatprep.subr.mxu0 0.0
    %127 = vmatpush1.msra.mxu0 0.0
    %128 = vmatprep.subr.mxu0 0.0
    %129 = vmatpush1.msra.mxu0 0.0
    %130 = vmatprep.subr.mxu0 0.0
    %131 = vmatpush1.msra.mxu0 0.0
    %132 = vmatprep.subr.mxu0 0.0
    %133 = vmatpush1.msra.mxu0 0.0
    %134 = vmatprep.subr.mxu0 0.0
    %135 = vmatpush1.msra.mxu0 0.0
    %136 = vmatprep.subr.mxu0 0.0
    %137 = vmatpush1.msra.mxu0 0.0
    %138 = vmatprep.subr.mxu0 0.0
    %139 = vmatpush1.msra.mxu0 0.0
    %140 = vmatprep.subr.mxu0 0.0
    %141 = vmatpush1.msra.mxu0 0.0
    %142 = vmatprep.subr.mxu0 0.0
    %143 = vmatpush1.msra.mxu0 0.0
    %144 = vmatprep.subr.mxu0 0.0
    %145 = vmatpush1.msra.mxu0 0.0
    %146 = vmatprep.mubr.f32.mxu0 0.0
    %147 = vmatmul.mubr.f32.gmra.mrb[0].mxu0 %v43
    %v148 = vpop.f32.mrb[0].mxu0
    %v149 = vadd.f32 %v80, %v148
    %v150 = vpop.f32.mrb[0].mxu0
    %151 = vmatprep.mubr.f32.mxu0 0.0
    %152 = vmatmul.mubr.f32.gmra.mrb[0].mxu0 %v44
    %v153 = vpop.f32.mrb[0].mxu0
    %v154 = vadd.f32 %v80, %v153
    %v155 = vpop.f32.mrb[0].mxu0
    %156 = vmatprep.mubr.f32.mxu0 0.0
    %157 = vmatmul.mubr.f32.gmra.mrb[0].mxu0 %v45
    %v158 = vpop.f32.mrb[0].mxu0
    %v159 = vadd.f32 %v80, %v158
    %v160 = vpop.f32.mrb[0].mxu0
    %161 = vmatprep.mubr.f32.mxu0 0.0
    %162 = vmatmul.mubr.f32.gmra.mrb[0].mxu0 %v46
    %v163 = vpop.f32.mrb[0].mxu0
    %v164 = vadd.f32 %v80, %v163
    %v165 = vpop.f32.mrb[0].mxu0
    %166 = vmatprep.mubr.f32.mxu0 0.0
    %167 = vmatmul.mubr.f32.gmra.mrb[0].mxu0 %v47
    %v168 = vpop.f32.mrb[0].mxu0
    %v169 = vadd.f32 %v80, %v168
    %v170 = vpop.f32.mrb[0].mxu0
    %171 = vmatprep.mubr.f32.mxu0 0.0
    %172 = vmatmul.mubr.f32.gmra.mrb[0].mxu0 %v48
    %v173 = vpop.f32.mrb[0].mxu0
    %v174 = vadd.f32 %v80, %v173
    %v175 = vpop.f32.mrb[0].mxu0
    %176 = vmatprep.mubr.f32.mxu0 0.0
    %177 = vmatmul.mubr.f32.gmra.mrb[0].mxu0 %v49
    %v178 = vpop.f32.mrb[0].mxu0
    %v179 = vadd.f32 %v80, %v178
    %v180 = vpop.f32.mrb[0].mxu0
    %181 = vmatprep.mubr.f32.mxu0 0.0
    %182 = vmatmul.mubr.f32.gmra.mrb[0].mxu0 %v50
    %v183 = vpop.f32.mrb[0].mxu0
    %v184 = vadd.f32 %v80, %v183
    %v185 = vpop.f32.mrb[0].mxu0
    %186 = vmatprep.mubr.f32.mxu0 0.0
    %187 = vmatmul.mubr.f32.gmra.mrb[0].mxu0 %v51
    %v188 = vpop.f32.mrb[0].mxu0
    %v189 = vadd.f32 %v80, %v188
    %v190 = vpop.f32.mrb[0].mxu0
    %191 = vmatprep.mubr.f32.mxu0 0.0
    %192 = vmatmul.mubr.f32.gmra.mrb[0].mxu0 %v52
    %v193 = vpop.f32.mrb[0].mxu0
    %v194 = vadd.f32 %v80, %v193
    %v195 = vpop.f32.mrb[0].mxu0
    %196 = vmatprep.mubr.f32.mxu0 0.0
    %197 = vmatmul.mubr.f32.gmra.mrb[0].mxu0 %v53
    %v198 = vpop.f32.mrb[0].mxu0
    %v199 = vadd.f32 %v80, %v198
    %v200 = vpop.f32.mrb[0].mxu0
    %201 = vmatprep.mubr.f32.mxu0 0.0
    %202 = vmatmul.mubr.f32.gmra.mrb[0].mxu0 %v54
    %v203 = vpop.f32.mrb[0].mxu0
    %v204 = vadd.f32 %v80, %v203
    %v205 = vpop.f32.mrb[0].mxu0
    %206 = vmatprep.mubr.f32.mxu0 0.0
    %207 = vmatmul.mubr.f32.gmra.mrb[0].mxu0 %v55
    %v208 = vpop.f32.mrb[0].mxu0
    %v209 = vadd.f32 %v80, %v208
    %v210 = vpop.f32.mrb[0].mxu0
    %211 = vmatprep.mubr.f32.mxu0 0.0
    %212 = vmatmul.mubr.f32.gmra.mrb[0].mxu0 %v56
    %v213 = vpop.f32.mrb[0].mxu0
    %v214 = vadd.f32 %v80, %v213
    %v215 = vpop.f32.mrb[0].mxu0
    %216 = vmatprep.mubr.f32.mxu0 0.0
    %217 = vmatmul.mubr.f32.gmra.mrb[0].mxu0 %v57
    %v218 = vpop.f32.mrb[0].mxu0
    %v219 = vadd.f32 %v80, %v218
    %v220 = vpop.f32.mrb[0].mxu0
    %221 = vmatprep.mubr.f32.mxu0 0.0
    %222 = vmatmul.mubr.f32.gmra.mrb[0].mxu0 %v58
    %v223 = vpop.f32.mrb[0].mxu0
    %v224 = vadd.f32 %v80, %v223
    %v225 = vpop.f32.mrb[0].mxu0
    %226 = vdwg.mxu0
    %v227 = vtanh.pop %v149
    %v228 = vtanh.pop %v154
    %v229 = vtanh.pop %v159
    %v230 = vtanh.pop %v164
    %v231 = vtanh.pop %v169
    %v232 = vtanh.pop %v174
    %v233 = vtanh.pop %v179
    %v234 = vtanh.pop %v184
    %v235 = vtanh.pop %v189
    %v236 = vtanh.pop %v194
    %v237 = vtanh.pop %v199
    %v238 = vtanh.pop %v204
    %v239 = vtanh.pop %v209
    %v240 = vtanh.pop %v214
    %v241 = vtanh.pop %v219
    %v242 = vtanh.pop %v224
    %s243 = scalar_lea.vmem [#allocation5], 128
    %v244 = vld [vmem:[%s243] sm:$0xff]
    %v245 = vld [vmem:[%s243 + $0x8] sm:$0xff]
    %v246 = vld [vmem:[%s243 + $0x10] sm:$0xff]
    %v247 = vld [vmem:[%s243 + $0x18] sm:$0xff]
    %v248 = vld [vmem:[%s243 + $0x20] sm:$0xff]
    %v249 = vld [vmem:[%s243 + $0x28] sm:$0xff]
    %v250 = vld [vmem:[%s243 + $0x30] sm:$0xff]
    %v251 = vld [vmem:[%s243 + $0x38] sm:$0xff]
    %v252 = vld [vmem:[%s243 + $0x40] sm:$0xff]
    %v253 = vld [vmem:[%s243 + $0x48] sm:$0xff]
    %v254 = vld [vmem:[%s243 + $0x50] sm:$0xff]
    %v255 = vld [vmem:[%s243 + $0x58] sm:$0xff]
    %v256 = vld [vmem:[%s243 + $0x60] sm:$0xff]
    %v257 = vld [vmem:[%s243 + $0x68] sm:$0xff]
    %v258 = vld [vmem:[%s243 + $0x70] sm:$0xff]
    %v259 = vld [vmem:[%s243 + $0x78] sm:$0xff]
    %s260 = scalar_lea.vmem %s2, 1
    %v261 = vld [vmem:[%s260] sm:$0x1]
    %v263 = vlaneseq
    %v264 = vshrl.u32 %v263, 7
    %v265 = vsub.s32 0, %v264
    %v266 = vrot.slane %v261, %v265
    %268 = vmatprep.subr.mxu0 0.0
    %269 = vmatpush1.msra.mxu0 %v244
    %270 = vmatprep.subr.mxu0 0.0
    %271 = vmatpush1.msra.mxu0 %v245
    %272 = vmatprep.subr.mxu0 0.0
    %273 = vmatpush1.msra.mxu0 %v246
    %274 = vmatprep.subr.mxu0 0.0
    %275 = vmatpush1.msra.mxu0 %v247
    %276 = vmatprep.subr.mxu0 0.0
    %277 = vmatpush1.msra.mxu0 %v248
    %278 = vmatprep.subr.mxu0 0.0
    %279 = vmatpush1.msra.mxu0 %v249
    %280 = vmatprep.subr.mxu0 0.0
    %281 = vmatpush1.msra.mxu0 %v250
    %282 = vmatprep.subr.mxu0 0.0
    %283 = vmatpush1.msra.mxu0 %v251
    %284 = vmatprep.subr.mxu0 0.0
    %285 = vmatpush1.msra.mxu0 %v252
    %286 = vmatprep.subr.mxu0 0.0
    %287 = vmatpush1.msra.mxu0 %v253
    %288 = vmatprep.subr.mxu0 0.0
    %289 = vmatpush1.msra.mxu0 %v254
    %290 = vmatprep.subr.mxu0 0.0
    %291 = vmatpush1.msra.mxu0 %v255
    %292 = vmatprep.subr.mxu0 0.0
    %293 = vmatpush1.msra.mxu0 %v256
    %294 = vmatprep.subr.mxu0 0.0
    %295 = vmatpush1.msra.mxu0 %v257
    %296 = vmatprep.subr.mxu0 0.0
    %297 = vmatpush1.msra.mxu0 %v258
    %298 = vmatprep.subr.mxu0 0.0
    %299 = vmatpush1.msra.mxu0 %v259
    %300 = vmatprep.subr.mxu0 0.0
    %301 = vmatpush1.msra.mxu0 0.0
    %302 = vmatprep.subr.mxu0 0.0
    %303 = vmatpush1.msra.mxu0 0.0
    %304 = vmatprep.subr.mxu0 0.0
    %305 = vmatpush1.msra.mxu0 0.0
    %306 = vmatprep.subr.mxu0 0.0
    %307 = vmatpush1.msra.mxu0 0.0
    %308 = vmatprep.subr.mxu0 0.0
    %309 = vmatpush1.msra.mxu0 0.0
    %310 = vmatprep.subr.mxu0 0.0
    %311 = vmatpush1.msra.mxu0 0.0
    %312 = vmatprep.subr.mxu0 0.0
    %313 = vmatpush1.msra.mxu0 0.0
    %314 = vmatprep.subr.mxu0 0.0
    %315 = vmatpush1.msra.mxu0 0.0
    %316 = vmatprep.subr.mxu0 0.0
    %317 = vmatpush1.msra.mxu0 0.0
    %318 = vmatprep.subr.mxu0 0.0
    %319 = vmatpush1.msra.mxu0 0.0
    %320 = vmatprep.subr.mxu0 0.0
    %321 = vmatpush1.msra.mxu0 0.0
    %322 = vmatprep.subr.mxu0 0.0
    %323 = vmatpush1.msra.mxu0 0.0
    %324 = vmatprep.subr.mxu0 0.0
    %325 = vmatpush1.msra.mxu0 0.0
    %326 = vmatprep.subr.mxu0 0.0
    %327 = vmatpush1.msra.mxu0 0.0
    %328 = vmatprep.subr.mxu0 0.0
    %329 = vmatpush1.msra.mxu0 0.0
    %330 = vmatprep.subr.mxu0 0.0
    %331 = vmatpush1.msra.mxu0 0.0
    %332 = vmatprep.mubr.f32.mxu0 0.0
    %333 = vmatmul.mubr.f32.gmra.mrb[0].mxu0 %v227
    %v334 = vpop.f32.mrb[0].mxu0
    %v335 = vadd.f32 %v266, %v334
    %v336 = vpop.f32.mrb[0].mxu0
    %337 = vmatprep.mubr.f32.mxu0 0.0
    %338 = vmatmul.mubr.f32.gmra.mrb[0].mxu0 %v228
    %v339 = vpop.f32.mrb[0].mxu0
    %v340 = vadd.f32 %v266, %v339
    %v341 = vpop.f32.mrb[0].mxu0
    %342 = vmatprep.mubr.f32.mxu0 0.0
    %343 = vmatmul.mubr.f32.gmra.mrb[0].mxu0 %v229
    %v344 = vpop.f32.mrb[0].mxu0
    %v345 = vadd.f32 %v266, %v344
    %v346 = vpop.f32.mrb[0].mxu0
    %347 = vmatprep.mubr.f32.mxu0 0.0
    %348 = vmatmul.mubr.f32.gmra.mrb[0].mxu0 %v230
    %v349 = vpop.f32.mrb[0].mxu0
    %v350 = vadd.f32 %v266, %v349
    %v351 = vpop.f32.mrb[0].mxu0
    %352 = vmatprep.mubr.f32.mxu0 0.0
    %353 = vmatmul.mubr.f32.gmra.mrb[0].mxu0 %v231
    %v354 = vpop.f32.mrb[0].mxu0
    %v355 = vadd.f32 %v266, %v354
    %v356 = vpop.f32.mrb[0].mxu0
    %357 = vmatprep.mubr.f32.mxu0 0.0
    %358 = vmatmul.mubr.f32.gmra.mrb[0].mxu0 %v232
    %v359 = vpop.f32.mrb[0].mxu0
    %v360 = vadd.f32 %v266, %v359
    %v361 = vpop.f32.mrb[0].mxu0
    %362 = vmatprep.mubr.f32.mxu0 0.0
    %363 = vmatmul.mubr.f32.gmra.mrb[0].mxu0 %v233
    %v364 = vpop.f32.mrb[0].mxu0
    %v365 = vadd.f32 %v266, %v364
    %v366 = vpop.f32.mrb[0].mxu0
    %367 = vmatprep.mubr.f32.mxu0 0.0
    %368 = vmatmul.mubr.f32.gmra.mrb[0].mxu0 %v234
    %v369 = vpop.f32.mrb[0].mxu0
    %v370 = vadd.f32 %v266, %v369
    %v371 = vpop.f32.mrb[0].mxu0
    %372 = vmatprep.mubr.f32.mxu0 0.0
    %373 = vmatmul.mubr.f32.gmra.mrb[0].mxu0 %v235
    %v374 = vpop.f32.mrb[0].mxu0
    %v375 = vadd.f32 %v266, %v374
    %v376 = vpop.f32.mrb[0].mxu0
    %377 = vmatprep.mubr.f32.mxu0 0.0
    %378 = vmatmul.mubr.f32.gmra.mrb[0].mxu0 %v236
    %v379 = vpop.f32.mrb[0].mxu0
    %v380 = vadd.f32 %v266, %v379
    %v381 = vpop.f32.mrb[0].mxu0
    %382 = vmatprep.mubr.f32.mxu0 0.0
    %383 = vmatmul.mubr.f32.gmra.mrb[0].mxu0 %v237
    %v384 = vpop.f32.mrb[0].mxu0
    %v385 = vadd.f32 %v266, %v384
    %v386 = vpop.f32.mrb[0].mxu0
    %387 = vmatprep.mubr.f32.mxu0 0.0
    %388 = vmatmul.mubr.f32.gmra.mrb[0].mxu0 %v238
    %v389 = vpop.f32.mrb[0].mxu0
    %v390 = vadd.f32 %v266, %v389
    %v391 = vpop.f32.mrb[0].mxu0
    %392 = vmatprep.mubr.f32.mxu0 0.0
    %393 = vmatmul.mubr.f32.gmra.mrb[0].mxu0 %v239
    %v394 = vpop.f32.mrb[0].mxu0
    %v395 = vadd.f32 %v266, %v394
    %v396 = vpop.f32.mrb[0].mxu0
    %397 = vmatprep.mubr.f32.mxu0 0.0
    %398 = vmatmul.mubr.f32.gmra.mrb[0].mxu0 %v240
    %v399 = vpop.f32.mrb[0].mxu0
    %v400 = vadd.f32 %v266, %v399
    %v401 = vpop.f32.mrb[0].mxu0
    %402 = vmatprep.mubr.f32.mxu0 0.0
    %403 = vmatmul.mubr.f32.gmra.mrb[0].mxu0 %v241
    %v404 = vpop.f32.mrb[0].mxu0
    %v405 = vadd.f32 %v266, %v404
    %v406 = vpop.f32.mrb[0].mxu0
    %407 = vmatprep.mubr.f32.mxu0 0.0
    %408 = vmatmul.mubr.f32.gmra.mrb[0].mxu0 %v242
    %v409 = vpop.f32.mrb[0].mxu0
    %v410 = vadd.f32 %v266, %v409
    %v411 = vpop.f32.mrb[0].mxu0
    %412 = vdwg.mxu0
    %v413 = vtanh.pop %v335
    %v414 = vtanh.pop %v340
    %v415 = vtanh.pop %v345
    %v416 = vtanh.pop %v350
    %v417 = vtanh.pop %v355
    %v418 = vtanh.pop %v360
    %v419 = vtanh.pop %v365
    %v420 = vtanh.pop %v370
    %v421 = vtanh.pop %v375
    %v422 = vtanh.pop %v380
    %v423 = vtanh.pop %v385
    %v424 = vtanh.pop %v390
    %v425 = vtanh.pop %v395
    %v426 = vtanh.pop %v400
    %v427 = vtanh.pop %v405
    %v428 = vtanh.pop %v410
    %s429 = scalar_lea.vmem [#allocation5], 256
    %v430 = vld [vmem:[%s429] sm:$0xff]
    %v431 = vld [vmem:[%s429 + $0x8] sm:$0xff]
    %v432 = vld [vmem:[%s429 + $0x10] sm:$0xff]
    %v433 = vld [vmem:[%s429 + $0x18] sm:$0xff]
    %v434 = vld [vmem:[%s429 + $0x20] sm:$0xff]
    %v435 = vld [vmem:[%s429 + $0x28] sm:$0xff]
    %v436 = vld [vmem:[%s429 + $0x30] sm:$0xff]
    %v437 = vld [vmem:[%s429 + $0x38] sm:$0xff]
    %v438 = vld [vmem:[%s429 + $0x40] sm:$0xff]
    %v439 = vld [vmem:[%s429 + $0x48] sm:$0xff]
    %v440 = vld [vmem:[%s429 + $0x50] sm:$0xff]
    %v441 = vld [vmem:[%s429 + $0x58] sm:$0xff]
    %v442 = vld [vmem:[%s429 + $0x60] sm:$0xff]
    %v443 = vld [vmem:[%s429 + $0x68] sm:$0xff]
    %v444 = vld [vmem:[%s429 + $0x70] sm:$0xff]
    %v445 = vld [vmem:[%s429 + $0x78] sm:$0xff]
    %s446 = scalar_lea.vmem %s2, 2
    %v447 = vld [vmem:[%s446] sm:$0x1]
    %v449 = vlaneseq
    %v450 = vshrl.u32 %v449, 7
    %v451 = vsub.s32 0, %v450
    %v452 = vrot.slane %v447, %v451
    %454 = vmatprep.subr.mxu0 0.0
    %455 = vmatpush1.msra.mxu0 %v430
    %456 = vmatprep.subr.mxu0 0.0
    %457 = vmatpush1.msra.mxu0 %v431
    %458 = vmatprep.subr.mxu0 0.0
    %459 = vmatpush1.msra.mxu0 %v432
    %460 = vmatprep.subr.mxu0 0.0
    %461 = vmatpush1.msra.mxu0 %v433
    %462 = vmatprep.subr.mxu0 0.0
    %463 = vmatpush1.msra.mxu0 %v434
    %464 = vmatprep.subr.mxu0 0.0
    %465 = vmatpush1.msra.mxu0 %v435
    %466 = vmatprep.subr.mxu0 0.0
    %467 = vmatpush1.msra.mxu0 %v436
    %468 = vmatprep.subr.mxu0 0.0
    %469 = vmatpush1.msra.mxu0 %v437
    %470 = vmatprep.subr.mxu0 0.0
    %471 = vmatpush1.msra.mxu0 %v438
    %472 = vmatprep.subr.mxu0 0.0
    %473 = vmatpush1.msra.mxu0 %v439
    %474 = vmatprep.subr.mxu0 0.0
    %475 = vmatpush1.msra.mxu0 %v440
    %476 = vmatprep.subr.mxu0 0.0
    %477 = vmatpush1.msra.mxu0 %v441
    %478 = vmatprep.subr.mxu0 0.0
    %479 = vmatpush1.msra.mxu0 %v442
    %480 = vmatprep.subr.mxu0 0.0
    %481 = vmatpush1.msra.mxu0 %v443
    %482 = vmatprep.subr.mxu0 0.0
    %483 = vmatpush1.msra.mxu0 %v444
    %484 = vmatprep.subr.mxu0 0.0
    %485 = vmatpush1.msra.mxu0 %v445
    %486 = vmatprep.subr.mxu0 0.0
    %487 = vmatpush1.msra.mxu0 0.0
    %488 = vmatprep.subr.mxu0 0.0
    %489 = vmatpush1.msra.mxu0 0.0
    %490 = vmatprep.subr.mxu0 0.0
    %491 = vmatpush1.msra.mxu0 0.0
    %492 = vmatprep.subr.mxu0 0.0
    %493 = vmatpush1.msra.mxu0 0.0
    %494 = vmatprep.subr.mxu0 0.0
    %495 = vmatpush1.msra.mxu0 0.0
    %496 = vmatprep.subr.mxu0 0.0
    %497 = vmatpush1.msra.mxu0 0.0
    %498 = vmatprep.subr.mxu0 0.0
    %499 = vmatpush1.msra.mxu0 0.0
    %500 = vmatprep.subr.mxu0 0.0
    %501 = vmatpush1.msra.mxu0 0.0
    %502 = vmatprep.subr.mxu0 0.0
    %503 = vmatpush1.msra.mxu0 0.0
    %504 = vmatprep.subr.mxu0 0.0
    %505 = vmatpush1.msra.mxu0 0.0
    %506 = vmatprep.subr.mxu0 0.0
    %507 = vmatpush1.msra.mxu0 0.0
    %508 = vmatprep.subr.mxu0 0.0
    %509 = vmatpush1.msra.mxu0 0.0
    %510 = vmatprep.subr.mxu0 0.0
    %511 = vmatpush1.msra.mxu0 0.0
    %512 = vmatprep.subr.mxu0 0.0
    %513 = vmatpush1.msra.mxu0 0.0
    %514 = vmatprep.subr.mxu0 0.0
    %515 = vmatpush1.msra.mxu0 0.0
    %516 = vmatprep.subr.mxu0 0.0
    %517 = vmatpush1.msra.mxu0 0.0
    %518 = vmatprep.mubr.f32.mxu0 0.0
    %519 = vmatmul.mubr.f32.gmra.mrb[0].mxu0 %v413
    %v520 = vpop.f32.mrb[0].mxu0
    %v521 = vadd.f32 %v452, %v520
    %v522 = vpop.f32.mrb[0].mxu0
    %523 = vmatprep.mubr.f32.mxu0 0.0
    %524 = vmatmul.mubr.f32.gmra.mrb[0].mxu0 %v414
    %v525 = vpop.f32.mrb[0].mxu0
    %v526 = vadd.f32 %v452, %v525
    %v527 = vpop.f32.mrb[0].mxu0
    %528 = vmatprep.mubr.f32.mxu0 0.0
    %529 = vmatmul.mubr.f32.gmra.mrb[0].mxu0 %v415
    %v530 = vpop.f32.mrb[0].mxu0
    %v531 = vadd.f32 %v452, %v530
    %v532 = vpop.f32.mrb[0].mxu0
    %533 = vmatprep.mubr.f32.mxu0 0.0
    %534 = vmatmul.mubr.f32.gmra.mrb[0].mxu0 %v416
    %v535 = vpop.f32.mrb[0].mxu0
    %v536 = vadd.f32 %v452, %v535
    %v537 = vpop.f32.mrb[0].mxu0
    %538 = vmatprep.mubr.f32.mxu0 0.0
    %539 = vmatmul.mubr.f32.gmra.mrb[0].mxu0 %v417
    %v540 = vpop.f32.mrb[0].mxu0
    %v541 = vadd.f32 %v452, %v540
    %v542 = vpop.f32.mrb[0].mxu0
    %543 = vmatprep.mubr.f32.mxu0 0.0
    %544 = vmatmul.mubr.f32.gmra.mrb[0].mxu0 %v418
    %v545 = vpop.f32.mrb[0].mxu0
    %v546 = vadd.f32 %v452, %v545
    %v547 = vpop.f32.mrb[0].mxu0
    %548 = vmatprep.mubr.f32.mxu0 0.0
    %549 = vmatmul.mubr.f32.gmra.mrb[0].mxu0 %v419
    %v550 = vpop.f32.mrb[0].mxu0
    %v551 = vadd.f32 %v452, %v550
    %v552 = vpop.f32.mrb[0].mxu0
    %553 = vmatprep.mubr.f32.mxu0 0.0
    %554 = vmatmul.mubr.f32.gmra.mrb[0].mxu0 %v420
    %v555 = vpop.f32.mrb[0].mxu0
    %v556 = vadd.f32 %v452, %v555
    %v557 = vpop.f32.mrb[0].mxu0
    %558 = vmatprep.mubr.f32.mxu0 0.0
    %559 = vmatmul.mubr.f32.gmra.mrb[0].mxu0 %v421
    %v560 = vpop.f32.mrb[0].mxu0
    %v561 = vadd.f32 %v452, %v560
    %v562 = vpop.f32.mrb[0].mxu0
    %563 = vmatprep.mubr.f32.mxu0 0.0
    %564 = vmatmul.mubr.f32.gmra.mrb[0].mxu0 %v422
    %v565 = vpop.f32.mrb[0].mxu0
    %v566 = vadd.f32 %v452, %v565
    %v567 = vpop.f32.mrb[0].mxu0
    %568 = vmatprep.mubr.f32.mxu0 0.0
    %569 = vmatmul.mubr.f32.gmra.mrb[0].mxu0 %v423
    %v570 = vpop.f32.mrb[0].mxu0
    %v571 = vadd.f32 %v452, %v570
    %v572 = vpop.f32.mrb[0].mxu0
    %573 = vmatprep.mubr.f32.mxu0 0.0
    %574 = vmatmul.mubr.f32.gmra.mrb[0].mxu0 %v424
    %v575 = vpop.f32.mrb[0].mxu0
    %v576 = vadd.f32 %v452, %v575
    %v577 = vpop.f32.mrb[0].mxu0
    %578 = vmatprep.mubr.f32.mxu0 0.0
    %579 = vmatmul.mubr.f32.gmra.mrb[0].mxu0 %v425
    %v580 = vpop.f32.mrb[0].mxu0
    %v581 = vadd.f32 %v452, %v580
    %v582 = vpop.f32.mrb[0].mxu0
    %583 = vmatprep.mubr.f32.mxu0 0.0
    %584 = vmatmul.mubr.f32.gmra.mrb[0].mxu0 %v426
    %v585 = vpop.f32.mrb[0].mxu0
    %v586 = vadd.f32 %v452, %v585
    %v587 = vpop.f32.mrb[0].mxu0
    %588 = vmatprep.mubr.f32.mxu0 0.0
    %589 = vmatmul.mubr.f32.gmra.mrb[0].mxu0 %v427
    %v590 = vpop.f32.mrb[0].mxu0
    %v591 = vadd.f32 %v452, %v590
    %v592 = vpop.f32.mrb[0].mxu0
    %593 = vmatprep.mubr.f32.mxu0 0.0
    %594 = vmatmul.mubr.f32.gmra.mrb[0].mxu0 %v428
    %v595 = vpop.f32.mrb[0].mxu0
    %v596 = vadd.f32 %v452, %v595
    %v597 = vpop.f32.mrb[0].mxu0
    %598 = vdwg.mxu0
    %v599 = vtanh.pop %v521
    %v600 = vtanh.pop %v526
    %v601 = vtanh.pop %v531
    %v602 = vtanh.pop %v536
    %v603 = vtanh.pop %v541
    %v604 = vtanh.pop %v546
    %v605 = vtanh.pop %v551
    %v606 = vtanh.pop %v556
    %v607 = vtanh.pop %v561
    %v608 = vtanh.pop %v566
    %v609 = vtanh.pop %v571
    %v610 = vtanh.pop %v576
    %v611 = vtanh.pop %v581
    %v612 = vtanh.pop %v586
    %v613 = vtanh.pop %v591
    %v614 = vtanh.pop %v596
    %615 = vxpose.xlu0.b32.start [1/16] %v599, 128
    %616 = vxpose.xlu0.b32.cont [2/16] %v600, 128
    %617 = vxpose.xlu0.b32.cont [3/16] %v601, 128
    %618 = vxpose.xlu0.b32.cont [4/16] %v602, 128
    %619 = vxpose.xlu0.b32.cont [5/16] %v603, 128
    %620 = vxpose.xlu0.b32.cont [6/16] %v604, 128
    %621 = vxpose.xlu0.b32.cont [7/16] %v605, 128
    %622 = vxpose.xlu0.b32.cont [8/16] %v606, 128
    %623 = vxpose.xlu0.b32.cont [9/16] %v607, 128
    %624 = vxpose.xlu0.b32.cont [10/16] %v608, 128
    %625 = vxpose.xlu0.b32.cont [11/16] %v609, 128
    %626 = vxpose.xlu0.b32.cont [12/16] %v610, 128
    %627 = vxpose.xlu0.b32.cont [13/16] %v611, 128
    %628 = vxpose.xlu0.b32.cont [14/16] %v612, 128
    %629 = vxpose.xlu0.b32.cont [15/16] %v613, 128
    %630 = vxpose.xlu0.b32.end [16/16] %v614, 128
    %v631 = vpop.trf.xlu0
    %v632 = vpop.trf.xlu0
    %v633 = vpop.trf.xlu0
    %v634 = vpop.trf.xlu0
    %v635 = vpop.trf.xlu0
    %v636 = vpop.trf.xlu0
    %v637 = vpop.trf.xlu0
    %v638 = vpop.trf.xlu0
    %v639 = vpop.trf.xlu0
    %v640 = vpop.trf.xlu0
    %v641 = vpop.trf.xlu0
    %v642 = vpop.trf.xlu0
    %v643 = vpop.trf.xlu0
    %v644 = vpop.trf.xlu0
    %v645 = vpop.trf.xlu0
    %v646 = vpop.trf.xlu0
    %647 = vst [vmem:[#allocation7] sm:$0x3] %v631
    // Predicated region
    $region22: #{tpu_custom_call.1} parent=1 // pred_check
      _
    $region23: #{tpu_custom_call.1} parent=1 // pred_check_branch
      %649 = sbr.rel (0) target = $region25
    $region24: #{tpu_custom_call.1} parent=1 // pred_region
      %s651 = ssub.s32 32, 32
      %652 = vsyncadd [#allocation4], %s651
      %s654 = sshll.u32 [#allocation7], 4
      %s655 = int_to_ptr.vmem [resolvable:$true] %s654
      %657 = dma.vmem_to_hbm [thread:$0]  %s655, 32, %s3, [#allocation4]
    $region25: #{tpu_custom_call.1} parent=1 // pred_fallthru
      _
    // Predicated region
    $region26: #{tpu_custom_call.1} parent=1 // pred_check
      _
    $region27: #{tpu_custom_call.1} parent=1 // pred_check_branch
      %659 = sbr.rel (0) target = $region29
    $region28: #{tpu_custom_call.1} parent=1 // pred_region
      %660 = dma.done [#allocation4], 32
    $region29: #{tpu_custom_call.1} parent=1 // pred_fallthru
      _
    %661 = vsyncpa [#allocation3], 1
    %662 = vsyncpa [#allocation6], 1
    %663 = vsyncpa [#allocation4], 1

</llo_original>
